<compile_context>
chip_gen: v7x
topology: tpu7x:2x2x1
jax: 0.10.0
libtpu: 0.0.40
codegen_flags: <defaults>
</compile_context>

<pallas_src>
import functools
import math
from typing import Dict

import jax
import jax.numpy as jnp
from jax.experimental import pallas as pl
from jax.experimental.pallas import tpu as pltpu


# ----------------------------- Pallas kernel -------------------------------

def _fused_kernel(num_features, max_period, aug_ref, temb_ref, w_ref, b_ref, out_ref):
    f = num_features
    half = f // 2
    neg_log = jnp.float32(-math.log(max_period))
    half_f = jnp.float32(half)

    # --- sinusoidal embedding built in-register (no concat): column c < half holds
    #     cos(t * freq[c]), column c >= half holds sin(t * freq[c - half]).
    # TODO(synk): convention assumed concat(cos, sin) with freqs = exp(-log(1e4)*i/half);
    # verify against the actual torch TimestepEmbeddingProjection if porting weights.
    col_i = jax.lax.broadcasted_iota(jnp.int32, (1, f), 1)        # [1, F] int lane iota
    is_cos = col_i < half
    col = col_i.astype(jnp.float32)
    j = jnp.where(is_cos, col, col - half_f)                      # frequency index
    freqs = jnp.exp(j * neg_log / half_f)                         # [1, F]
    t = aug_ref[...]                                              # [B, 1] f32
    args = t * freqs                                              # [B, F]
    emb = jnp.where(is_cos, jnp.cos(args), jnp.sin(args))         # [B, F]

    # --- MLP: Linear -> SiLU -> Linear, residual add into the timestep embedding ---
    b = b_ref[...]                                                # [2, D]
    w1 = w_ref[0:f, :]                                            # [F, D] (aligned static slice)
    w2 = w_ref[f:, :]                                             # [D, D]
    h = jnp.dot(emb, w1, preferred_element_type=jnp.float32) + b[0:1, :]
    h = h * jax.nn.sigmoid(h)                                     # SiLU (EUP sigmoid + VPU mul)
    p = jnp.dot(h, w2, preferred_element_type=jnp.float32) + b[1:2, :]
    out_ref[...] = temb_ref[...] + p.astype(out_ref.dtype)


@functools.partial(jax.jit, static_argnames=("num_features", "max_period"))
def _projection_add(aug_t_col, temb, w_packed, b_packed, *, num_features,
                    max_period=10000.0):
    vmem = pl.BlockSpec(memory_space=pltpu.MemorySpace.VMEM)
    kernel = functools.partial(_fused_kernel, num_features, float(max_period))
    return pl.pallas_call(
        kernel,
        out_shape=jax.ShapeDtypeStruct(temb.shape, temb.dtype),
        in_specs=[vmem, vmem, vmem, vmem],
        out_specs=vmem,
        input_output_aliases={1: 0},        # reuse the timestep_embedding HBM buffer
    )(aug_t_col, temb, w_packed, b_packed)


# ------------------------------- params / module ----------------------------

def init_params(key, num_features: int, time_embedding_mult: int):
    d = num_features * time_embedding_mult
    k1, k2, k3, k4 = jax.random.split(key, 4)
    lim1 = 1.0 / math.sqrt(num_features)
    lim2 = 1.0 / math.sqrt(d)
    w1 = jax.random.uniform(k1, (num_features, d), jnp.float32, -lim1, lim1)
    b1 = jax.random.uniform(k2, (1, d), jnp.float32, -lim1, lim1)
    w2 = jax.random.uniform(k3, (d, d), jnp.float32, -lim2, lim2)
    b2 = jax.random.uniform(k4, (1, d), jnp.float32, -lim2, lim2)
    # Pre-packed slabs so the kernel needs only 2 parameter DMAs.
    return {
        "w_packed": jnp.concatenate([w1, w2], axis=0),   # [F + D, D]
        "b_packed": jnp.concatenate([b1, b2], axis=0),   # [2, D]
    }


def gaussian_conditioning_augmentation_to_timestep(
    context: Dict, params: Dict, num_features: int
) -> Dict:
    assert "timestep_embedding" in context
    assert "augmentation_timestep" in context
    aug_t = context["augmentation_timestep"]
    temb = context["timestep_embedding"]
    aug_t_col = aug_t.astype(jnp.float32).reshape(-1, 1)   # [B, 1]
    new_temb = _projection_add(
        aug_t_col, temb, params["w_packed"], params["b_packed"],
        num_features=num_features,
    )
    # TODO(synk): torch module's host-side NaN print+assert is a debug check only;
    # not replicated inside the kernel.
    new_context = dict(context)
    new_context["timestep_embedding"] = new_temb
    return new_context


# ------------------------------- reference ----------------------------------

def _sinusoidal_embedding_ref(timesteps, dim, max_period=10000.0):
    half = dim // 2
    freqs = jnp.exp(
        -math.log(max_period) * jnp.arange(half, dtype=jnp.float32) / float(half)
    )
    args = timesteps.astype(jnp.float32)[:, None] * freqs[None, :]
    return jnp.concatenate([jnp.cos(args), jnp.sin(args)], axis=-1)


def _reference(context, params, num_features):
    f = num_features
    w1 = params["w_packed"][:f]
    w2 = params["w_packed"][f:]
    b1 = params["b_packed"][0:1]
    b2 = params["b_packed"][1:2]
    emb = _sinusoidal_embedding_ref(context["augmentation_timestep"], f)
    h = emb @ w1 + b1
    h = h * jax.nn.sigmoid(h)
    p = h @ w2 + b2
    return context["timestep_embedding"] + p.astype(
        context["timestep_embedding"].dtype
    )


if __name__ == "__main__":
    num_features = 32
    time_embedding_mult = 4          # D = 128 -> lane-dense output slab
    batch = 8
    d = num_features * time_embedding_mult

    key = jax.random.PRNGKey(0)
    kp, kt, ke = jax.random.split(key, 3)
    params = init_params(kp, num_features, time_embedding_mult)

    context = {
        "augmentation_timestep": jax.random.randint(kt, (batch,), 0, 1000).astype(
            jnp.float32
        ),
        "timestep_embedding": jax.random.normal(ke, (batch, d), jnp.float32),
    }

    # Compute the reference before the kernel call (output aliases the temb buffer).
    ref = jax.block_until_ready(_reference(context, params, num_features))

    out_ctx = gaussian_conditioning_augmentation_to_timestep(
        context, params, num_features
    )
    result = jax.block_until_ready(out_ctx["timestep_embedding"])

    assert result.shape == (batch, d)
    assert result.dtype == jnp.float32
    assert not bool(jnp.isnan(result).any())
    # Tolerance covers in-kernel (Mosaic) cos/sin vs XLA cos/sin for args up to ~1e3.
    assert bool(jnp.allclose(result, ref, atol=5e-3, rtol=5e-3)), float(
        jnp.max(jnp.abs(result - ref))
    )

    print("KERNEL_OK")
</pallas_src>

<mosaic_0001>
module attributes {stable_mosaic.version = 11 : i64} {
  func.func @_fused_kernel(%arg0: memref<8x1xf32, #tpu.memory_space<vmem>>, %arg1: memref<8x128xf32, #tpu.memory_space<vmem>>, %arg2: memref<160x128xf32, #tpu.memory_space<vmem>>, %arg3: memref<2x128xf32, #tpu.memory_space<vmem>>, %arg4: memref<8x128xf32, #tpu.memory_space<vmem>>) attributes {dimension_semantics = [], scalar_prefetch = 0 : i64, scratch_operands = 0 : i64, tpu.core_type = #tpu.core_type<tc>} {
    %0 = tpu.iota {dimensions = array<i32: 1>} : vector<1x32xi32>
    %c16_i32 = arith.constant 16 : i32
    %1 = vector.broadcast %c16_i32 : i32 to vector<1x32xi32>
    %2 = arith.cmpi slt, %0, %1 : vector<1x32xi32>
    %3 = arith.sitofp %0 : vector<1x32xi32> to vector<1x32xf32>
    %cst = arith.constant 1.600000e+01 : f32
    %4 = vector.broadcast %cst : f32 to vector<1x32xf32>
    %5 = arith.subf %3, %4 : vector<1x32xf32>
    %6 = arith.select %2, %3, %5 : vector<1x32xi1>, vector<1x32xf32>
    %cst_0 = arith.constant -9.21034049 : f32
    %7 = vector.broadcast %cst_0 : f32 to vector<1x32xf32>
    %8 = arith.mulf %6, %7 : vector<1x32xf32>
    %cst_1 = arith.constant 1.600000e+01 : f32
    %9 = vector.broadcast %cst_1 : f32 to vector<1x32xf32>
    %10 = arith.divf %8, %9 : vector<1x32xf32>
    %11 = math.exp %10 : vector<1x32xf32>
    %c0 = arith.constant 0 : index
    %c0_2 = arith.constant 0 : index
    %12 = vector.load %arg0[%c0, %c0_2] : memref<8x1xf32, #tpu.memory_space<vmem>>, vector<8x1xf32>
    %13 = vector.broadcast %12 : vector<8x1xf32> to vector<8x32xf32>
    %14 = vector.broadcast %11 : vector<1x32xf32> to vector<8x32xf32>
    %15 = arith.mulf %13, %14 : vector<8x32xf32>
    %16 = math.cos %15 : vector<8x32xf32>
    %17 = math.sin %15 : vector<8x32xf32>
    %18 = vector.shape_cast %2 : vector<1x32xi1> to vector<1x32xi1>
    %19 = vector.broadcast %18 : vector<1x32xi1> to vector<8x32xi1>
    %20 = arith.select %19, %16, %17 : vector<8x32xi1>, vector<8x32xf32>
    %c0_3 = arith.constant 0 : index
    %c0_4 = arith.constant 0 : index
    %21 = vector.load %arg3[%c0_3, %c0_4] : memref<2x128xf32, #tpu.memory_space<vmem>>, vector<2x128xf32>
    %c0_5 = arith.constant 0 : index
    %c0_6 = arith.constant 0 : index
    %22 = vector.load %arg2[%c0_5, %c0_6] : memref<160x128xf32, #tpu.memory_space<vmem>>, vector<32x128xf32>
    %c32 = arith.constant 32 : index
    %c0_7 = arith.constant 0 : index
    %23 = vector.load %arg2[%c32, %c0_7] : memref<160x128xf32, #tpu.memory_space<vmem>>, vector<128x128xf32>
    %cst_8 = arith.constant dense<0.000000e+00> : vector<8x128xf32>
    %24 = tpu.matmul %20, %22, %cst_8 {dimension_numbers = #tpu.dot_dimension_numbers<[1], [0], [0], [1], [0, 0, 1, 1], [], []>} : vector<8x32xf32>, vector<32x128xf32>, vector<8x128xf32> -> vector<8x128xf32>
    %25 = vector.extract_strided_slice %21 {offsets = [0, 0], sizes = [1, 128], strides = [1, 1]} : vector<2x128xf32> to vector<1x128xf32>
    %26 = vector.broadcast %25 : vector<1x128xf32> to vector<8x128xf32>
    %27 = arith.addf %24, %26 : vector<8x128xf32>
    %28 = arith.negf %27 : vector<8x128xf32>
    %29 = math.exp %28 : vector<8x128xf32>
    %cst_9 = arith.constant 1.000000e+00 : f32
    %30 = vector.broadcast %cst_9 : f32 to vector<8x128xf32>
    %31 = arith.addf %30, %29 : vector<8x128xf32>
    %32 = arith.divf %30, %31 : vector<8x128xf32>
    %33 = arith.mulf %27, %32 : vector<8x128xf32>
    %cst_10 = arith.constant dense<0.000000e+00> : vector<8x128xf32>
    %34 = tpu.matmul %33, %23, %cst_10 {dimension_numbers = #tpu.dot_dimension_numbers<[1], [0], [0], [1], [0, 0, 1, 1], [], []>} : vector<8x128xf32>, vector<128x128xf32>, vector<8x128xf32> -> vector<8x128xf32>
    %35 = vector.extract_strided_slice %21 {offsets = [1, 0], sizes = [1, 128], strides = [1, 1]} : vector<2x128xf32> to vector<1x128xf32>
    %36 = vector.broadcast %35 : vector<1x128xf32> to vector<8x128xf32>
    %37 = arith.addf %34, %36 : vector<8x128xf32>
    %c0_11 = arith.constant 0 : index
    %c0_12 = arith.constant 0 : index
    %38 = vector.load %arg1[%c0_11, %c0_12] : memref<8x128xf32, #tpu.memory_space<vmem>>, vector<8x128xf32>
    %39 = arith.addf %38, %37 : vector<8x128xf32>
    %c0_13 = arith.constant 0 : index
    %c0_14 = arith.constant 0 : index
    %40 = vector.load %arg4[%c0_13, %c0_14] : memref<8x128xf32, #tpu.memory_space<vmem>>, vector<8x128xf32>
    tpu.vector_store %arg4[%c0_13, %c0_14], %39 {strides = array<i32>} : memref<8x128xf32, #tpu.memory_space<vmem>>, vector<8x128xf32>,
    return
  }
}

</mosaic_0001>

<llo_original>
// kernel: _projection_add.1
$region0: #{_projection_add.1}
  #allocation0 [shape = 'u32[]', space=smem, size = 0x4, offset = 0x4, fixed_abs, tag = 'smem constant byte address 0x4 - core index']
  #allocation1 [shape = 'u32[144,128]{1,0:T(1,128)}', space=vmem, size = 0x12000, scoped, tag = 'internal scratch']
  %s0 = inlined_call_operand.vmem [shape: f32[8,1], index: 0, kind: input, shape index: {}]
  %s1 = inlined_call_operand.hbm [shape: f32[8,128], index: 1, kind: input, shape index: {}, may-alias: {1,4}]
  %s2 = inlined_call_operand.hbm [shape: f32[160,128], index: 2, kind: input, shape index: {}]
  %s3 = inlined_call_operand.vmem [shape: f32[2,128], index: 3, kind: input, shape index: {}]
  %s4 = inlined_call_operand.hbm [shape: f32[8,128], index: 4, kind: output, shape index: {}, may-alias: {1,4}]
  %s5 = sld [smem:[#allocation0]]
  $region34: #{_projection_add.1} parent=0
    _
  %s7 = ssub.s32 1, %s5
  %s8 = scalar_select 0, %s7, %s5
  $region1: #{_projection_add.1} parent=0
    #allocation2 [shape = 'u8[4096]{0}', space=vmem, size = 0x1000, scoped, tag = 'input window, operand 1, single buffered']
    #allocation3 [shape = 's32[1]{0}', space=sflag, size = 0x4, scoped, tag = 'scoped memory for _projection_add.1']
    #allocation4 [shape = 's32[1]{0}', space=sflag, size = 0x4, scoped, tag = 'scoped memory for _projection_add.1']
    #allocation5 [shape = 'u8[81920]{0}', space=vmem, size = 0x14000, scoped, tag = 'input window, operand 2, single buffered']
    #allocation6 [shape = 's32[1]{0}', space=sflag, size = 0x4, scoped, tag = 'scoped memory for _projection_add.1']
    #allocation7 [shape = 'u8[4096]{0}', space=vmem, size = 0x1000, scoped, tag = 'output window, operand 0, single buffered']
    %9 = vsyncpa [#allocation3], 0
    %10 = vsyncpa [#allocation6], 0
    %11 = vsyncpa [#allocation4], 0
    // Predicated region
    $region2: #{_projection_add.1} parent=1 // pred_check
      _
    $region3: #{_projection_add.1} parent=1 // pred_check_branch
      %13 = sbr.rel (0) target = $region5
    $region4: #{_projection_add.1} parent=1 // pred_region
      _
    $region5: #{_projection_add.1} parent=1 // pred_fallthru
      _
    // Predicated region
    $region6: #{_projection_add.1} parent=1 // pred_check
      _
    $region7: #{_projection_add.1} parent=1 // pred_check_branch
      %15 = sbr.rel (0) target = $region9
    $region8: #{_projection_add.1} parent=1 // pred_region
      %s17 = ssub.s32 128, 128
      %18 = vsyncadd [#allocation3], %s17
      %s20 = sshll.u32 [#allocation2], 4
      %s21 = int_to_ptr.vmem [resolvable:$true] %s20
      %23 = dma.hbm_to_vmem [thread:$0]  %s1, 128, %s21, [#allocation3]
    $region9: #{_projection_add.1} parent=1 // pred_fallthru
      _
    // Predicated region
    $region10: #{_projection_add.1} parent=1 // pred_check
      _
    $region11: #{_projection_add.1} parent=1 // pred_check_branch
      %25 = sbr.rel (0) target = $region13
    $region12: #{_projection_add.1} parent=1 // pred_region
      %s27 = ssub.s32 2560, 2560
      %28 = vsyncadd [#allocation6], %s27
      %s29 = sshll.u32 [#allocation5], 4
      %s30 = int_to_ptr.vmem [resolvable:$true] %s29
      %35 = dma.hbm_to_vmem [thread:$0]  %s2, 2560, %s30, [#allocation6], 128, 128, 8
    $region13: #{_projection_add.1} parent=1 // pred_fallthru
      _
    // Predicated region
    $region14: #{_projection_add.1} parent=1 // pred_check
      _
    $region15: #{_projection_add.1} parent=1 // pred_check_branch
      %37 = sbr.rel (0) target = $region17
    $region16: #{_projection_add.1} parent=1 // pred_region
      _
    $region17: #{_projection_add.1} parent=1 // pred_fallthru
      _
    // Predicated region
    $region18: #{_projection_add.1} parent=1 // pred_check
      _
    $region19: #{_projection_add.1} parent=1 // pred_check_branch
      %39 = sbr.rel (0) target = $region21
    $region20: #{_projection_add.1} parent=1 // pred_region
      %40 = dma.done [#allocation3], 128
    $region21: #{_projection_add.1} parent=1 // pred_fallthru
      _
    // Predicated region
    $region22: #{_projection_add.1} parent=1 // pred_check
      _
    $region23: #{_projection_add.1} parent=1 // pred_check_branch
      %42 = sbr.rel (0) target = $region25
    $region24: #{_projection_add.1} parent=1 // pred_region
      %43 = dma.done [#allocation6], 2560
    $region25: #{_projection_add.1} parent=1 // pred_fallthru
      _
    %v44 = vlaneseq
    %v45 = vand.u32 %v44, 127
    %vm46 = vcmp.lt.s32.totalorder %v45, 16
    %v47 = vcvt.s32.f32 %v45
    %v48 = vsub.f32 %v47, 16.0
    %v49 = vsel %vm46, %v47, %v48
    %v50 = vmul.f32 %v49, -9.2103405
    %v51 = vrcp.pop 16.0
    %v52 = vmul.f32 %v50, %v51
    %v53 = vmul.f32 %v52, 1.442695
    %v54 = vpow.pop %v53
    %v55 = vld [vmem:[%s0] sm:$0xff]
    %57 = vset.pattern.permute.xlu0 0
    %58 = vperm.xlu0 %57, %v55
    %v59 = vpop.permute.xlu0 %58
    %v61 = vmul.f32 %v59, %v54
    %v62 = vand.u32 2147483647, %v61
    %vm63 = vcmp.le.f32.partialorder %v62, 0.7853982
    %vm64 = vcmp.lt.s32.totalorder %v61, 0
    %v65 = vand.u32 %v61, 2139095040
    %v66 = vshrl.u32 %v65, 23
    %v67 = vsub.s32 %v66, 127
    %v68 = vand.u32 2147483647, %v61
    %v69 = vand.u32 %v68, 8388607
    %v70 = vor.u32 %v69, 8388608
    %v71 = vsub.s32 0, %v70
    %v72 = vadd.s32 %v67, 1
    %vm73 = vcmp.gt.s32.totalorder %v72, 0
    %v74 = vsel %vm73, %v72, 0
    %v75 = vshrl.u32 %v74, 5
    %v76 = vand.u32 %v74, 31
    %v77 = vsub.s32 32, %v76
    %v78 = vshrl.u32 683565275, %v77
    %v79 = vshll.u32 683565275, %v76
    %v80 = vshrl.u32 2475754826, %v77
    %v81 = vor.u32 %v79, %v80
    %v82 = vshll.u32 2475754826, %v76
    %v83 = vshrl.u32 2131351028, %v77
    %v84 = vor.u32 %v82, %v83
    %v85 = vshll.u32 2131351028, %v76
    %v86 = vshrl.u32 2102212464, %v77
    %v87 = vor.u32 %v85, %v86
    %v88 = vshll.u32 2102212464, %v76
    %v89 = vshrl.u32 920167782, %v77
    %v90 = vor.u32 %v88, %v89
    %v91 = vshll.u32 920167782, %v76
    %v92 = vshrl.u32 1326507024, %v77
    %v93 = vor.u32 %v91, %v92
    %vm94 = vcmp.lt.s32.totalorder %v75, 1
    %vm95 = vcmp.lt.s32.totalorder %v75, 2
    %vm96 = vcmp.lt.s32.totalorder %v75, 3
    %vm97 = vcmp.lt.s32.totalorder %v75, 4
    %v98 = vsel %vm94, %v78, %v81
    %v99 = vsel %vm97, %v87, 2102212464
    %v100 = vsel %vm96, %v84, %v99
    %v101 = vsel %vm95, %v98, %v100
    %v102 = vsel %vm94, %v81, %v84
    %v103 = vsel %vm97, %v90, 920167782
    %v104 = vsel %vm96, %v87, %v103
    %v105 = vsel %vm95, %v102, %v104
    %v106 = vsel %vm94, %v84, %v87
    %v107 = vsel %vm97, %v93, 1326507024
    %v108 = vsel %vm96, %v90, %v107
    %v109 = vsel %vm95, %v106, %v108
    %v110 = vshll.u32 %v70, 8
    %v111 = vmul.u32.u64.compose %v110, %v109
    %v112 = vextract.low.u32 %v111
    %v113 = vextract.high.u32 %v111
    %v114 = vmul.u32.u64.compose %v110, %v105
    %v115 = vextract.low.u32 %v114
    %v116 = vextract.high.u32 %v114
    %v117 = vmul.u32 %v110, %v101
    %v118 = vadd.s32 %v113, %v115
    %vm119 = vc.u32 %v113, %v115
    %v120 = vadd.s32 %v116, 1
    %v121 = vsel %vm119, %v120, %v116
    %v122 = vadd.s32 %v117, %v121
    %v123 = vadd.s32 %v122, 536870912
    %v124 = vshrl.u32 %v123, 30
    %v125 = vshll.u32 %v124, 30
    %v126 = vsub.s32 %v122, %v125
    %vm127 = vcmp.lt.s32.totalorder %v126, 0
    %v128 = vsub.s32 0, %v126
    %v129 = vsel %vm127, %v128, %v126
    %v130 = vclz %v129
    %v131 = vsub.s32 %v130, 2
    %vm132 = vcmp.gt.s32.totalorder 0, %v131
    %v133 = vsel %vm132, 0, %v131
    %v134 = vsub.s32 32, %v133
    %v135 = vshll.u32 %v126, %v133
    %v136 = vshrl.u32 %v118, %v134
    %v137 = vor.u32 %v135, %v136
    %v138 = vsub.s32 4294967266, %v133
    %v139 = vadd.s32 %v138, 127
    %v140 = vshll.u32 %v139, 23
    %v141 = vor.u32 4788187, %v140
    %v142 = vand.u32 2147483647, %v141
    %v144 = vcvt.s32.f32 %v137
    %v145 = vmul.f32 %v144, %v142
    %v146 = vxor.u32 %v145, 2147483648
    %v147 = vsel %vm64, %v146, %v145
    %v148 = vsub.s32 4, %v124
    %v149 = vsel %vm64, %v148, %v124
    %v150 = vsel %vm63, %v61, %v147
    %v151 = vsel %vm63, 0, %v149
    %v152 = vcosq.f32.pop %v150
    %v153 = vsinq.f32.pop %v150
    %vm154 = vweird.f32 %v61
    %v155 = vand.u32 %v151, 3
    %vm156 = vcmp.lt.s32.totalorder %v155, 2
    %vm157 = vcmp.eq.s32.totalorder %v155, 0
    %v158 = vxor.u32 %v153, 2147483648
    %v159 = vsel %vm157, %v152, %v158
    %vm160 = vcmp.eq.s32.totalorder %v155, 2
    %v161 = vxor.u32 %v152, 2147483648
    %v162 = vsel %vm160, %v161, %v153
    %v163 = vsel %vm156, %v159, %v162
    %v164 = vsel %vm154, nan, %v163
    %v165 = vand.u32 2147483647, %v61
    %vm166 = vcmp.le.f32.partialorder %v165, 0.7853982
    %vm167 = vcmp.lt.s32.totalorder %v61, 0
    %v168 = vand.u32 %v61, 2139095040
    %v169 = vshrl.u32 %v168, 23
    %v170 = vsub.s32 %v169, 127
    %v171 = vand.u32 2147483647, %v61
    %v172 = vand.u32 %v171, 8388607
    %v173 = vor.u32 %v172, 8388608
    %v174 = vsub.s32 0, %v173
    %v175 = vadd.s32 %v170, 1
    %vm176 = vcmp.gt.s32.totalorder %v175, 0
    %v177 = vsel %vm176, %v175, 0
    %v178 = vshrl.u32 %v177, 5
    %v179 = vand.u32 %v177, 31
    %v180 = vsub.s32 32, %v179
    %v181 = vshrl.u32 683565275, %v180
    %v182 = vshll.u32 683565275, %v179
    %v183 = vshrl.u32 2475754826, %v180
    %v184 = vor.u32 %v182, %v183
    %v185 = vshll.u32 2475754826, %v179
    %v186 = vshrl.u32 2131351028, %v180
    %v187 = vor.u32 %v185, %v186
    %v188 = vshll.u32 2131351028, %v179
    %v189 = vshrl.u32 2102212464, %v180
    %v190 = vor.u32 %v188, %v189
    %v191 = vshll.u32 2102212464, %v179
    %v192 = vshrl.u32 920167782, %v180
    %v193 = vor.u32 %v191, %v192
    %v194 = vshll.u32 920167782, %v179
    %v195 = vshrl.u32 1326507024, %v180
    %v196 = vor.u32 %v194, %v195
    %vm197 = vcmp.lt.s32.totalorder %v178, 1
    %vm198 = vcmp.lt.s32.totalorder %v178, 2
    %vm199 = vcmp.lt.s32.totalorder %v178, 3
    %vm200 = vcmp.lt.s32.totalorder %v178, 4
    %v201 = vsel %vm197, %v181, %v184
    %v202 = vsel %vm200, %v190, 2102212464
    %v203 = vsel %vm199, %v187, %v202
    %v204 = vsel %vm198, %v201, %v203
    %v205 = vsel %vm197, %v184, %v187
    %v206 = vsel %vm200, %v193, 920167782
    %v207 = vsel %vm199, %v190, %v206
    %v208 = vsel %vm198, %v205, %v207
    %v209 = vsel %vm197, %v187, %v190
    %v210 = vsel %vm200, %v196, 1326507024
    %v211 = vsel %vm199, %v193, %v210
    %v212 = vsel %vm198, %v209, %v211
    %v213 = vshll.u32 %v173, 8
    %v214 = vmul.u32.u64.compose %v213, %v212
    %v215 = vextract.low.u32 %v214
    %v216 = vextract.high.u32 %v214
    %v217 = vmul.u32.u64.compose %v213, %v208
    %v218 = vextract.low.u32 %v217
    %v219 = vextract.high.u32 %v217
    %v220 = vmul.u32 %v213, %v204
    %v221 = vadd.s32 %v216, %v218
    %vm222 = vc.u32 %v216, %v218
    %v223 = vadd.s32 %v219, 1
    %v224 = vsel %vm222, %v223, %v219
    %v225 = vadd.s32 %v220, %v224
    %v226 = vadd.s32 %v225, 536870912
    %v227 = vshrl.u32 %v226, 30
    %v228 = vshll.u32 %v227, 30
    %v229 = vsub.s32 %v225, %v228
    %vm230 = vcmp.lt.s32.totalorder %v229, 0
    %v231 = vsub.s32 0, %v229
    %v232 = vsel %vm230, %v231, %v229
    %v233 = vclz %v232
    %v234 = vsub.s32 %v233, 2
    %vm235 = vcmp.gt.s32.totalorder 0, %v234
    %v236 = vsel %vm235, 0, %v234
    %v237 = vsub.s32 32, %v236
    %v238 = vshll.u32 %v229, %v236
    %v239 = vshrl.u32 %v221, %v237
    %v240 = vor.u32 %v238, %v239
    %v241 = vsub.s32 4294967266, %v236
    %v242 = vadd.s32 %v241, 127
    %v243 = vshll.u32 %v242, 23
    %v244 = vor.u32 4788187, %v243
    %v245 = vand.u32 2147483647, %v244
    %v247 = vcvt.s32.f32 %v240
    %v248 = vmul.f32 %v247, %v245
    %v249 = vxor.u32 %v248, 2147483648
    %v250 = vsel %vm167, %v249, %v248
    %v251 = vsub.s32 4, %v227
    %v252 = vsel %vm167, %v251, %v227
    %v253 = vsel %vm166, %v61, %v250
    %v254 = vsel %vm166, 0, %v252
    %v255 = vcosq.f32.pop %v253
    %v256 = vsinq.f32.pop %v253
    %vm257 = vweird.f32 %v61
    %v258 = vadd.s32 %v254, 3
    %v259 = vand.u32 %v258, 3
    %vm260 = vcmp.lt.s32.totalorder %v259, 2
    %vm261 = vcmp.eq.s32.totalorder %v259, 0
    %v262 = vxor.u32 %v256, 2147483648
    %v263 = vsel %vm261, %v255, %v262
    %vm264 = vcmp.eq.s32.totalorder %v259, 2
    %v265 = vxor.u32 %v255, 2147483648
    %v266 = vsel %vm264, %v265, %v256
    %v267 = vsel %vm260, %v263, %v266
    %v268 = vsel %vm257, nan, %v267
    %v269 = vsel %vm46, 1, 0
    %vm270 = vcmp.eq.s32.totalorder %v269, 1
    %v271 = vsel %vm270, %v164, %v268
    %v272 = vld [vmem:[%s3] sm:$0x3]
    %v273 = vld [vmem:[#allocation5] sm:$0xff]
    %v274 = vld [vmem:[#allocation5 + $0x8] sm:$0xff]
    %v275 = vld [vmem:[#allocation5 + $0x10] sm:$0xff]
    %v276 = vld [vmem:[#allocation5 + $0x18] sm:$0xff]
    %v277 = vld [vmem:[#allocation5 + $0x20] sm:$0xff]
    %v278 = vld [vmem:[#allocation5 + $0x28] sm:$0xff]
    %v279 = vld [vmem:[#allocation5 + $0x30] sm:$0xff]
    %v280 = vld [vmem:[#allocation5 + $0x38] sm:$0xff]
    %v281 = vld [vmem:[#allocation5 + $0x40] sm:$0xff]
    %v282 = vld [vmem:[#allocation5 + $0x48] sm:$0xff]
    %v283 = vld [vmem:[#allocation5 + $0x50] sm:$0xff]
    %v284 = vld [vmem:[#allocation5 + $0x58] sm:$0xff]
    %v285 = vld [vmem:[#allocation5 + $0x60] sm:$0xff]
    %v286 = vld [vmem:[#allocation5 + $0x68] sm:$0xff]
    %v287 = vld [vmem:[#allocation5 + $0x70] sm:$0xff]
    %v288 = vld [vmem:[#allocation5 + $0x78] sm:$0xff]
    %v289 = vld [vmem:[#allocation5 + $0x80] sm:$0xff]
    %v290 = vld [vmem:[#allocation5 + $0x88] sm:$0xff]
    %v291 = vld [vmem:[#allocation5 + $0x90] sm:$0xff]
    %v292 = vld [vmem:[#allocation5 + $0x98] sm:$0xff]
    %v293 = vlaneseq
    %v294 = vshrl.u32 %v293, 7
    %v295 = vsub.s32 0, %v294
    %v296 = vrot.slane %v272, %v295
    %vm297 = vcmask 261120
    %v299 = vsel %vm297, %v271, 0
    %301 = vmatprep.subr.mxu0 0.0
    %302 = vmatpush1.msra.mxu0 %v273
    %303 = vmatprep.subr.mxu0 0.0
    %304 = vmatpush1.msra.mxu0 %v274
    %305 = vmatprep.subr.mxu0 0.0
    %306 = vmatpush1.msra.mxu0 %v275
    %307 = vmatprep.subr.mxu0 0.0
    %308 = vmatpush1.msra.mxu0 %v276
    %309 = vmatprep.subr.mxu0 0.0
    %310 = vmatpush1.msra.mxu0 0.0
    %311 = vmatprep.subr.mxu0 0.0
    %312 = vmatpush1.msra.mxu0 0.0
    %313 = vmatprep.subr.mxu0 0.0
    %314 = vmatpush1.msra.mxu0 0.0
    %315 = vmatprep.subr.mxu0 0.0
    %316 = vmatpush1.msra.mxu0 0.0
    %317 = vmatprep.subr.mxu0 0.0
    %318 = vmatpush1.msra.mxu0 0.0
    %319 = vmatprep.subr.mxu0 0.0
    %320 = vmatpush1.msra.mxu0 0.0
    %321 = vmatprep.subr.mxu0 0.0
    %322 = vmatpush1.msra.mxu0 0.0
    %323 = vmatprep.subr.mxu0 0.0
    %324 = vmatpush1.msra.mxu0 0.0
    %325 = vmatprep.subr.mxu0 0.0
    %326 = vmatpush1.msra.mxu0 0.0
    %327 = vmatprep.subr.mxu0 0.0
    %328 = vmatpush1.msra.mxu0 0.0
    %329 = vmatprep.subr.mxu0 0.0
    %330 = vmatpush1.msra.mxu0 0.0
    %331 = vmatprep.subr.mxu0 0.0
    %332 = vmatpush1.msra.mxu0 0.0
    %333 = vmatprep.subr.mxu0 0.0
    %334 = vmatpush1.msra.mxu0 0.0
    %335 = vmatprep.subr.mxu0 0.0
    %336 = vmatpush1.msra.mxu0 0.0
    %337 = vmatprep.subr.mxu0 0.0
    %338 = vmatpush1.msra.mxu0 0.0
    %339 = vmatprep.subr.mxu0 0.0
    %340 = vmatpush1.msra.mxu0 0.0
    %341 = vmatprep.subr.mxu0 0.0
    %342 = vmatpush1.msra.mxu0 0.0
    %343 = vmatprep.subr.mxu0 0.0
    %344 = vmatpush1.msra.mxu0 0.0
    %345 = vmatprep.subr.mxu0 0.0
    %346 = vmatpush1.msra.mxu0 0.0
    %347 = vmatprep.subr.mxu0 0.0
    %348 = vmatpush1.msra.mxu0 0.0
    %349 = vmatprep.subr.mxu0 0.0
    %350 = vmatpush1.msra.mxu0 0.0
    %351 = vmatprep.subr.mxu0 0.0
    %352 = vmatpush1.msra.mxu0 0.0
    %353 = vmatprep.subr.mxu0 0.0
    %354 = vmatpush1.msra.mxu0 0.0
    %355 = vmatprep.subr.mxu0 0.0
    %356 = vmatpush1.msra.mxu0 0.0
    %357 = vmatprep.subr.mxu0 0.0
    %358 = vmatpush1.msra.mxu0 0.0
    %359 = vmatprep.subr.mxu0 0.0
    %360 = vmatpush1.msra.mxu0 0.0
    %361 = vmatprep.subr.mxu0 0.0
    %362 = vmatpush1.msra.mxu0 0.0
    %363 = vmatprep.subr.mxu0 0.0
    %364 = vmatpush1.msra.mxu0 0.0
    %365 = vmatprep.mubr.f32.mxu0 0.0
    %366 = vmatmul.mubr.f32.gmra.mrb[0].mxu0 %v299
    %v367 = vpop.f32.mrb[0].mxu0
    %v368 = vadd.f32 %v296, %v367
    %v369 = vpop.f32.mrb[0].mxu0
    %370 = vdwg.mxu0
    %v371 = vxor.u32 %v368, 2147483648
    %v372 = vmul.f32 %v371, 1.442695
    %v373 = vpow.pop %v372
    %v374 = vadd.f32 %v373, 1.0
    %v375 = vrcp.pop %v374
    %v376 = vmul.f32 1.0, %v375
    %v377 = vmul.f32 %v368, %v376
    %v378 = vlaneseq
    %v379 = vshrl.u32 %v378, 7
    %v380 = vsub.s32 1, %v379
    %v381 = vrot.slane %v272, %v380
    %382 = vmatprep.subr.mxu0 0.0
    %383 = vmatpush1.msra.mxu0 %v277
    %384 = vmatprep.subr.mxu0 0.0
    %385 = vmatpush1.msra.mxu0 %v278
    %386 = vmatprep.subr.mxu0 0.0
    %387 = vmatpush1.msra.mxu0 %v279
    %388 = vmatprep.subr.mxu0 0.0
    %389 = vmatpush1.msra.mxu0 %v280
    %390 = vmatprep.subr.mxu0 0.0
    %391 = vmatpush1.msra.mxu0 %v281
    %392 = vmatprep.subr.mxu0 0.0
    %393 = vmatpush1.msra.mxu0 %v282
    %394 = vmatprep.subr.mxu0 0.0
    %395 = vmatpush1.msra.mxu0 %v283
    %396 = vmatprep.subr.mxu0 0.0
    %397 = vmatpush1.msra.mxu0 %v284
    %398 = vmatprep.subr.mxu0 0.0
    %399 = vmatpush1.msra.mxu0 %v285
    %400 = vmatprep.subr.mxu0 0.0
    %401 = vmatpush1.msra.mxu0 %v286
    %402 = vmatprep.subr.mxu0 0.0
    %403 = vmatpush1.msra.mxu0 %v287
    %404 = vmatprep.subr.mxu0 0.0
    %405 = vmatpush1.msra.mxu0 %v288
    %406 = vmatprep.subr.mxu0 0.0
    %407 = vmatpush1.msra.mxu0 %v289
    %408 = vmatprep.subr.mxu0 0.0
    %409 = vmatpush1.msra.mxu0 %v290
    %410 = vmatprep.subr.mxu0 0.0
    %411 = vmatpush1.msra.mxu0 %v291
    %412 = vmatprep.subr.mxu0 0.0
    %413 = vmatpush1.msra.mxu0 %v292
    %414 = vmatprep.subr.mxu0 0.0
    %415 = vmatpush1.msra.mxu0 0.0
    %416 = vmatprep.subr.mxu0 0.0
    %417 = vmatpush1.msra.mxu0 0.0
    %418 = vmatprep.subr.mxu0 0.0
    %419 = vmatpush1.msra.mxu0 0.0
    %420 = vmatprep.subr.mxu0 0.0
    %421 = vmatpush1.msra.mxu0 0.0
    %422 = vmatprep.subr.mxu0 0.0
    %423 = vmatpush1.msra.mxu0 0.0
    %424 = vmatprep.subr.mxu0 0.0
    %425 = vmatpush1.msra.mxu0 0.0
    %426 = vmatprep.subr.mxu0 0.0
    %427 = vmatpush1.msra.mxu0 0.0
    %428 = vmatprep.subr.mxu0 0.0
    %429 = vmatpush1.msra.mxu0 0.0
    %430 = vmatprep.subr.mxu0 0.0
    %431 = vmatpush1.msra.mxu0 0.0
    %432 = vmatprep.subr.mxu0 0.0
    %433 = vmatpush1.msra.mxu0 0.0
    %434 = vmatprep.subr.mxu0 0.0
    %435 = vmatpush1.msra.mxu0 0.0
    %436 = vmatprep.subr.mxu0 0.0
    %437 = vmatpush1.msra.mxu0 0.0
    %438 = vmatprep.subr.mxu0 0.0
    %439 = vmatpush1.msra.mxu0 0.0
    %440 = vmatprep.subr.mxu0 0.0
    %441 = vmatpush1.msra.mxu0 0.0
    %442 = vmatprep.subr.mxu0 0.0
    %443 = vmatpush1.msra.mxu0 0.0
    %444 = vmatprep.subr.mxu0 0.0
    %445 = vmatpush1.msra.mxu0 0.0
    %446 = vmatprep.mubr.f32.mxu0 0.0
    %447 = vmatmul.mubr.f32.gmra.mrb[0].mxu0 %v377
    %v448 = vpop.f32.mrb[0].mxu0
    %v449 = vadd.f32 %v381, %v448
    %v450 = vpop.f32.mrb[0].mxu0
    %451 = vdwg.mxu0
    %v452 = vld [vmem:[#allocation2] sm:$0xff]
    %v453 = vadd.f32 %v452, %v449
    %454 = vst [vmem:[#allocation7] sm:$0xff] %v453
    // Predicated region
    $region26: #{_projection_add.1} parent=1 // pred_check
      _
    $region27: #{_projection_add.1} parent=1 // pred_check_branch
      %456 = sbr.rel (0) target = $region29
    $region28: #{_projection_add.1} parent=1 // pred_region
      %s458 = ssub.s32 128, 128
      %459 = vsyncadd [#allocation4], %s458
      %s461 = sshll.u32 [#allocation7], 4
      %s462 = int_to_ptr.vmem [resolvable:$true] %s461
      %464 = dma.vmem_to_hbm [thread:$0]  %s462, 128, %s4, [#allocation4]
    $region29: #{_projection_add.1} parent=1 // pred_fallthru
      _
    // Predicated region
    $region30: #{_projection_add.1} parent=1 // pred_check
      _
    $region31: #{_projection_add.1} parent=1 // pred_check_branch
      %466 = sbr.rel (0) target = $region33
    $region32: #{_projection_add.1} parent=1 // pred_region
      %467 = dma.done [#allocation4], 128
    $region33: #{_projection_add.1} parent=1 // pred_fallthru
      _
    %468 = vsyncpa [#allocation3], 1
    %469 = vsyncpa [#allocation6], 1
    %470 = vsyncpa [#allocation4], 1

</llo_original>
